<compile_context>
chip_gen: v5e
topology: v5e:2x2
jax: 0.10.0
libtpu: 0.0.40
codegen_flags: <defaults>
</compile_context>

<pallas_src>
import functools

import jax
import jax.numpy as jnp
from jax import lax
from jax.experimental import pallas as pl
from jax.experimental.pallas import tpu as pltpu


def _round_up(x, m):
    return (x + m - 1) // m * m


def _supcon_kernel(fq_ref, fkT_ref, lr_ref, lc_ref, out_ref,
                   m_ref, l_ref, ssim_ref, scnt_ref,
                   *, inv_temp, batch_size, tq, tk, has_pad):
    i = pl.program_id(0)           # row-tile index ("parallel")
    k = pl.program_id(1)           # column-tile index (reduction, "arbitrary")
    nk = pl.num_programs(1)
    neg_big = jnp.float32(-1e30)

    @pl.when(k == 0)
    def _init():
        m_ref[...] = jnp.full((tq, 1), neg_big, jnp.float32)
        l_ref[...] = jnp.zeros((tq, 1), jnp.float32)
        ssim_ref[...] = jnp.zeros((tq, 1), jnp.float32)
        scnt_ref[...] = jnp.zeros((tq, 1), jnp.float32)

    # Operands are already unit-normalized (wrapper).  Plain (M,K)x(K,N) MXU matmul
    # with f32 accumulation; 1/temperature applied on the f32 result so bf16
    # operands stay unit-scale (numerically safe for small temperatures).
    sim = jnp.dot(fq_ref[...], fkT_ref[...],
                  preferred_element_type=jnp.float32) * jnp.float32(inv_temp)

    pos_lbl = lr_ref[...] == lc_ref[...]            # (TQ, TK) same-label mask

    def update(sim_valid, pos_mask):
        # Online softmax denominator with running row max (flash-style).
        m_cur = jnp.max(sim_valid, axis=1, keepdims=True)
        m_new = jnp.maximum(m_ref[...], m_cur)
        alpha = jnp.exp(m_ref[...] - m_new)
        p = jnp.exp(sim_valid - m_new)              # masked (-1e30) -> exactly 0
        l_ref[...] = alpha * l_ref[...] + jnp.sum(p, axis=1, keepdims=True)
        m_ref[...] = m_new
        # Positive-pair accumulators (linear, no rescaling needed):
        #   sum_j(mask*log_prob) = sum_j(mask*sim) - sum_j(mask) * log_denom.
        ssim_ref[...] += jnp.sum(jnp.where(pos_mask, sim, 0.0),
                                 axis=1, keepdims=True)
        scnt_ref[...] += jnp.sum(pos_mask.astype(jnp.float32),
                                 axis=1, keepdims=True)

    # Fast path: interior tiles (no diagonal elements, no padded columns).
    interior = i != k
    if has_pad:
        interior = interior & (k != nk - 1)

    @pl.when(interior)
    def _fast():
        update(sim, pos_lbl)

    # Slow path: diagonal tile and/or last (padded) column tile.
    @pl.when(jnp.logical_not(interior))
    def _slow():
        row = i * tq + lax.broadcasted_iota(jnp.int32, (tq, tk), 0)
        col = k * tk + lax.broadcasted_iota(jnp.int32, (tq, tk), 1)
        valid = row != col
        if has_pad:
            valid = valid & (col < batch_size)
        update(jnp.where(valid, sim, neg_big), pos_lbl & valid)

    @pl.when(k == nk - 1)
    def _finalize():
        eps = jnp.float32(1e-6)
        log_denom = m_ref[...] + jnp.log(l_ref[...])                  # (TQ, 1)
        num = ssim_ref[...] - scnt_ref[...] * log_denom               # sum(mask*log_prob)
        mlpp = num * pl.reciprocal(scnt_ref[...] + eps, approx=True)  # EUP divide
        if has_pad:
            row_idx = i * tq + lax.broadcasted_iota(jnp.int32, (tq, 1), 0)
            out_ref[...] = jnp.where(row_idx < batch_size, -mlpp, 0.0)
        else:
            out_ref[...] = -mlpp


def contrastive_loss(features, labels, temperature=1.0, *,
                     tile=512, matmul_dtype=jnp.bfloat16,
                     vmem_limit_bytes=None):
    """features: [B, D] float; labels: [B] int.  Returns scalar f32 loss."""
    B, D = features.shape
    if labels.shape[0] != B:
        raise ValueError("Num of labels does not match num of features")
    if tile % 128 != 0:
        raise ValueError("tile must be a multiple of 128")

    # --- normalize once in the wrapper (f32), then pad + cast to matmul_dtype ---
    f32 = features.astype(jnp.float32)
    # F.normalize(dim=1): x / max(||x||, 1e-12) == x * rsqrt(max(||x||^2, 1e-24)).
    fn = f32 * lax.rsqrt(jnp.maximum(jnp.sum(f32 * f32, axis=1, keepdims=True),
                                     1e-24))

    D_pad = _round_up(max(D, 1), 128)

    # --- tile selection: TQ == TK; >= 2 row tiles when B permits (v7x megacore) ---
    B8 = _round_up(B, 8)
    if B8 >= 256:
        T = min(tile, _round_up(-(-B8 // 2), 128))   # guarantees >= 2 row tiles
        B_pad = _round_up(B, T)
    else:
        T = B8                                       # single full-dim tile
        B_pad = B8
    TQ = TK = T
    has_pad = B_pad != B

    fp = jnp.pad(fn, ((0, B_pad - B), (0, D_pad - D))).astype(matmul_dtype)
    fpT = fp.T                                       # (D_pad, B_pad) column operand
    lab = jnp.pad(labels.astype(jnp.int32), (0, B_pad - B), constant_values=-1)
    lab_row = lab.reshape(B_pad, 1)
    lab_col = lab.reshape(1, B_pad)

    grid = (B_pad // TQ, B_pad // TK)
    n_row_tiles = grid[0]
    itemsize = jnp.dtype(matmul_dtype).itemsize

    if vmem_limit_bytes is None:
        est = (4 * (TQ + TK) * D_pad * itemsize      # double-buffered feature tiles
               + 10 * TQ * TK * 4                    # in-kernel f32 temporaries
               + (2 << 20))                          # labels / out / scratch / slack
        vmem_limit_bytes = max(32 << 20, min(_round_up(est, 1 << 20), 100 << 20))

    kernel = functools.partial(
        _supcon_kernel, inv_temp=1.0 / float(temperature), batch_size=B,
        tq=TQ, tk=TK, has_pad=has_pad)

    per_row = pl.pallas_call(
        kernel,
        out_shape=jax.ShapeDtypeStruct((B_pad, 1), jnp.float32),
        grid_spec=pltpu.PrefetchScalarGridSpec(
            num_scalar_prefetch=0,
            grid=grid,
            in_specs=[
                pl.BlockSpec((TQ, D_pad), lambda i, k: (i, 0)),   # row features
                pl.BlockSpec((D_pad, TK), lambda i, k: (0, k)),   # col features (T)
                pl.BlockSpec((TQ, 1), lambda i, k: (i, 0)),       # labels (rows)
                pl.BlockSpec((1, TK), lambda i, k: (0, k)),       # labels (cols)
            ],
            out_specs=pl.BlockSpec((TQ, 1), lambda i, k: (i, 0)),
            scratch_shapes=[pltpu.VMEM((TQ, 1), jnp.float32)] * 4,  # m, l, ssim, scnt
        ),
        compiler_params=pltpu.CompilerParams(
            dimension_semantics=("parallel", "arbitrary"),
            vmem_limit_bytes=int(vmem_limit_bytes)),
        cost_estimate=pl.CostEstimate(
            flops=2 * B_pad * B_pad * D_pad + 8 * B_pad * B_pad,
            transcendentals=B_pad * B_pad + 4 * B_pad,
            # Column features (and column labels) are re-streamed once per row tile.
            bytes_accessed=int((1 + n_row_tiles) * B_pad * D_pad * itemsize
                               + (1 + n_row_tiles) * B_pad * 4
                               + B_pad * 4),
        ),
    )(fp, fpT, lab_row, lab_col)

    # Tiny final reduction (B elements) outside the kernel; padded rows are 0.
    return jnp.sum(per_row) / B


def _reference_loss(features, labels, temperature=1.0):
    eps = 1e-6
    B = features.shape[0]
    f = features.astype(jnp.float32)
    fn = f / jnp.maximum(jnp.linalg.norm(f, axis=1, keepdims=True), 1e-12)
    sim = (fn @ fn.T) / temperature
    mask = (labels[:, None] == labels[None, :]).astype(jnp.float32)
    logits_mask = 1.0 - jnp.eye(B, dtype=jnp.float32)
    mask = mask * logits_mask
    exp_logits = jnp.exp(sim) * logits_mask
    log_prob = sim - jnp.log(exp_logits.sum(1, keepdims=True))
    mlpp = (mask * log_prob).sum(1) / (mask.sum(1) + eps)
    return jnp.mean(-mlpp)


if __name__ == "__main__":
    # --- small case: single tile, f32 and bf16 operand paths ---
    key = jax.random.PRNGKey(0)
    kf, kl = jax.random.split(key)
    B, D = 8, 32
    feats = jax.random.normal(kf, (B, D), dtype=jnp.float32)
    labels = jax.random.randint(kl, (B,), 0, 4, dtype=jnp.int32)

    ref = _reference_loss(feats, labels, temperature=1.0)
    loss_f32 = contrastive_loss(feats, labels, temperature=1.0,
                                matmul_dtype=jnp.float32)
    loss_bf16 = contrastive_loss(feats, labels, temperature=1.0)
    jax.block_until_ready((loss_f32, loss_bf16))
    assert jnp.allclose(loss_f32, ref, atol=1e-2, rtol=1e-2), (loss_f32, ref)
    assert jnp.allclose(loss_bf16, ref, atol=5e-2, rtol=5e-2), (loss_bf16, ref)

    # --- larger case: multi-tile grid (fast + slow paths), padding, online softmax,
    #     small temperature ---
    kf2, kl2 = jax.random.split(jax.random.PRNGKey(1))
    B2, D2 = 300, 40
    feats2 = jax.random.normal(kf2, (B2, D2), dtype=jnp.float32)
    labels2 = jax.random.randint(kl2, (B2,), 0, 10, dtype=jnp.int32)

    ref2 = _reference_loss(feats2, labels2, temperature=0.1)
    loss2_f32 = contrastive_loss(feats2, labels2, temperature=0.1,
                                 matmul_dtype=jnp.float32)
    loss2_bf16 = contrastive_loss(feats2, labels2, temperature=0.1)
    jax.block_until_ready((loss2_f32, loss2_bf16))
    assert jnp.allclose(loss2_f32, ref2, atol=1e-2, rtol=1e-2), (loss2_f32, ref2)
    assert jnp.allclose(loss2_bf16, ref2, atol=1e-1, rtol=5e-2), (loss2_bf16, ref2)

    print("KERNEL_OK")
</pallas_src>

<mosaic_0001>
module attributes {stable_mosaic.version = 11 : i64} {
  func.func @_supcon_kernel(%arg0: i32, %arg1: i32, %arg2: memref<8x128xf32, #tpu.memory_space<vmem>>, %arg3: memref<128x8xf32, #tpu.memory_space<vmem>>, %arg4: memref<8x1xi32, #tpu.memory_space<vmem>>, %arg5: memref<1x8xi32, #tpu.memory_space<vmem>>, %arg6: memref<8x1xf32, #tpu.memory_space<vmem>>, %arg7: memref<8x1xf32, #tpu.memory_space<vmem>>, %arg8: memref<8x1xf32, #tpu.memory_space<vmem>>, %arg9: memref<8x1xf32, #tpu.memory_space<vmem>>, %arg10: memref<8x1xf32, #tpu.memory_space<vmem>>) attributes {dimension_semantics = [#tpu.dimension_semantics<parallel>, #tpu.dimension_semantics<arbitrary>], iteration_bounds = array<i64: 1, 1>, scalar_prefetch = 0 : i64, scratch_operands = 4 : i64, tpu.core_type = #tpu.core_type<tc>, window_params = [{transform_indices = @transform_0, window_bounds = array<i64: 8, 128>}, {transform_indices = @transform_1, window_bounds = array<i64: 128, 8>}, {transform_indices = @transform_2, window_bounds = array<i64: 8, 1>}, {transform_indices = @transform_3, window_bounds = array<i64: 1, 8>}, {transform_indices = @transform_4, window_bounds = array<i64: 8, 1>}]} {
    %c0_i32 = arith.constant 0 : i32
    %0 = arith.cmpi eq, %arg1, %c0_i32 : i32
    %1 = arith.extui %0 : i1 to i32
    %cst = arith.constant -1.000000e+30 : f32
    %c0_i32_0 = arith.constant 0 : i32
    %2 = arith.cmpi ne, %1, %c0_i32_0 : i32
    scf.if %2 {
      %22 = vector.broadcast %cst : f32 to vector<8x1xf32>
      %c0_15 = arith.constant 0 : index
      %c0_16 = arith.constant 0 : index
      %23 = vector.load %arg7[%c0_15, %c0_16] : memref<8x1xf32, #tpu.memory_space<vmem>>, vector<8x1xf32>
      tpu.vector_store %arg7[%c0_15, %c0_16], %22 {strides = array<i32>} : memref<8x1xf32, #tpu.memory_space<vmem>>, vector<8x1xf32>,
      %cst_17 = arith.constant 0.000000e+00 : f32
      %24 = vector.broadcast %cst_17 : f32 to vector<8x1xf32>
      %c0_18 = arith.constant 0 : index
      %c0_19 = arith.constant 0 : index
      %25 = vector.load %arg8[%c0_18, %c0_19] : memref<8x1xf32, #tpu.memory_space<vmem>>, vector<8x1xf32>
      tpu.vector_store %arg8[%c0_18, %c0_19], %24 {strides = array<i32>} : memref<8x1xf32, #tpu.memory_space<vmem>>, vector<8x1xf32>,
      %cst_20 = arith.constant 0.000000e+00 : f32
      %26 = vector.broadcast %cst_20 : f32 to vector<8x1xf32>
      %c0_21 = arith.constant 0 : index
      %c0_22 = arith.constant 0 : index
      %27 = vector.load %arg9[%c0_21, %c0_22] : memref<8x1xf32, #tpu.memory_space<vmem>>, vector<8x1xf32>
      tpu.vector_store %arg9[%c0_21, %c0_22], %26 {strides = array<i32>} : memref<8x1xf32, #tpu.memory_space<vmem>>, vector<8x1xf32>,
      %cst_23 = arith.constant 0.000000e+00 : f32
      %28 = vector.broadcast %cst_23 : f32 to vector<8x1xf32>
      %c0_24 = arith.constant 0 : index
      %c0_25 = arith.constant 0 : index
      %29 = vector.load %arg10[%c0_24, %c0_25] : memref<8x1xf32, #tpu.memory_space<vmem>>, vector<8x1xf32>
      tpu.vector_store %arg10[%c0_24, %c0_25], %28 {strides = array<i32>} : memref<8x1xf32, #tpu.memory_space<vmem>>, vector<8x1xf32>,
    } else {
    }
    %c0 = arith.constant 0 : index
    %c0_1 = arith.constant 0 : index
    %3 = vector.load %arg2[%c0, %c0_1] : memref<8x128xf32, #tpu.memory_space<vmem>>, vector<8x128xf32>
    %c0_2 = arith.constant 0 : index
    %c0_3 = arith.constant 0 : index
    %4 = vector.load %arg3[%c0_2, %c0_3] : memref<128x8xf32, #tpu.memory_space<vmem>>, vector<128x8xf32>
    %cst_4 = arith.constant dense<0.000000e+00> : vector<8x8xf32>
    %5 = tpu.matmul %3, %4, %cst_4 {dimension_numbers = #tpu.dot_dimension_numbers<[1], [0], [0], [1], [0, 0, 1, 1], [], []>} : vector<8x128xf32>, vector<128x8xf32>, vector<8x8xf32> -> vector<8x8xf32>
    %cst_5 = arith.constant 1.000000e+00 : f32
    %6 = vector.broadcast %cst_5 : f32 to vector<8x8xf32>
    %7 = arith.mulf %5, %6 : vector<8x8xf32>
    %c0_6 = arith.constant 0 : index
    %c0_7 = arith.constant 0 : index
    %8 = vector.load %arg4[%c0_6, %c0_7] : memref<8x1xi32, #tpu.memory_space<vmem>>, vector<8x1xi32>
    %c0_8 = arith.constant 0 : index
    %c0_9 = arith.constant 0 : index
    %9 = vector.load %arg5[%c0_8, %c0_9] : memref<1x8xi32, #tpu.memory_space<vmem>>, vector<1x8xi32>
    %10 = vector.broadcast %8 : vector<8x1xi32> to vector<8x8xi32>
    %11 = vector.broadcast %9 : vector<1x8xi32> to vector<8x8xi32>
    %12 = arith.cmpi eq, %10, %11 : vector<8x8xi32>
    %13 = arith.cmpi ne, %arg0, %arg1 : i32
    %14 = arith.extui %13 : i1 to i32
    %c0_i32_10 = arith.constant 0 : i32
    %15 = arith.cmpi ne, %14, %c0_i32_10 : i32
    scf.if %15 {
      %cst_15 = arith.constant dense<0xFF800000> : vector<8xf32>
      %22 = vector.multi_reduction <maximumf>, %7, %cst_15 [1] : vector<8x8xf32> to vector<8xf32>
      %23 = vector.shape_cast %22 : vector<8xf32> to vector<8x1xf32>
      %c0_16 = arith.constant 0 : index
      %c0_17 = arith.constant 0 : index
      %24 = vector.load %arg7[%c0_16, %c0_17] : memref<8x1xf32, #tpu.memory_space<vmem>>, vector<8x1xf32>
      %25 = arith.maximumf %24, %23 : vector<8x1xf32>
      %c0_18 = arith.constant 0 : index
      %c0_19 = arith.constant 0 : index
      %26 = vector.load %arg7[%c0_18, %c0_19] : memref<8x1xf32, #tpu.memory_space<vmem>>, vector<8x1xf32>
      %27 = arith.subf %26, %25 : vector<8x1xf32>
      %28 = math.exp %27 : vector<8x1xf32>
      %29 = vector.broadcast %25 : vector<8x1xf32> to vector<8x8xf32>
      %30 = arith.subf %7, %29 : vector<8x8xf32>
      %31 = math.exp %30 : vector<8x8xf32>
      %c0_20 = arith.constant 0 : index
      %c0_21 = arith.constant 0 : index
      %32 = vector.load %arg8[%c0_20, %c0_21] : memref<8x1xf32, #tpu.memory_space<vmem>>, vector<8x1xf32>
      %33 = arith.mulf %28, %32 : vector<8x1xf32>
      %cst_22 = arith.constant dense<0.000000e+00> : vector<8xf32>
      %34 = vector.multi_reduction <add>, %31, %cst_22 [1] : vector<8x8xf32> to vector<8xf32>
      %35 = vector.shape_cast %34 : vector<8xf32> to vector<8x1xf32>
      %36 = arith.addf %33, %35 : vector<8x1xf32>
      %c0_23 = arith.constant 0 : index
      %c0_24 = arith.constant 0 : index
      %37 = vector.load %arg8[%c0_23, %c0_24] : memref<8x1xf32, #tpu.memory_space<vmem>>, vector<8x1xf32>
      tpu.vector_store %arg8[%c0_23, %c0_24], %36 {strides = array<i32>} : memref<8x1xf32, #tpu.memory_space<vmem>>, vector<8x1xf32>,
      %c0_25 = arith.constant 0 : index
      %c0_26 = arith.constant 0 : index
      %38 = vector.load %arg7[%c0_25, %c0_26] : memref<8x1xf32, #tpu.memory_space<vmem>>, vector<8x1xf32>
      tpu.vector_store %arg7[%c0_25, %c0_26], %25 {strides = array<i32>} : memref<8x1xf32, #tpu.memory_space<vmem>>, vector<8x1xf32>,
      %c0_27 = arith.constant 0 : index
      %c0_28 = arith.constant 0 : index
      %39 = vector.load %arg9[%c0_27, %c0_28] : memref<8x1xf32, #tpu.memory_space<vmem>>, vector<8x1xf32>
      %cst_29 = arith.constant 0.000000e+00 : f32
      %40 = vector.broadcast %cst_29 : f32 to vector<8x8xf32>
      %41 = arith.select %12, %7, %40 : vector<8x8xi1>, vector<8x8xf32>
      %cst_30 = arith.constant dense<0.000000e+00> : vector<8xf32>
      %42 = vector.multi_reduction <add>, %41, %cst_30 [1] : vector<8x8xf32> to vector<8xf32>
      %43 = vector.shape_cast %42 : vector<8xf32> to vector<8x1xf32>
      %44 = arith.addf %39, %43 : vector<8x1xf32>
      %c0_31 = arith.constant 0 : index
      %c0_32 = arith.constant 0 : index
      %45 = vector.load %arg9[%c0_31, %c0_32] : memref<8x1xf32, #tpu.memory_space<vmem>>, vector<8x1xf32>
      tpu.vector_store %arg9[%c0_31, %c0_32], %44 {strides = array<i32>} : memref<8x1xf32, #tpu.memory_space<vmem>>, vector<8x1xf32>,
      %c0_33 = arith.constant 0 : index
      %c0_34 = arith.constant 0 : index
      %46 = vector.load %arg10[%c0_33, %c0_34] : memref<8x1xf32, #tpu.memory_space<vmem>>, vector<8x1xf32>
      %47 = arith.extui %12 : vector<8x8xi1> to vector<8x8xi32>
      %48 = arith.sitofp %47 : vector<8x8xi32> to vector<8x8xf32>
      %cst_35 = arith.constant dense<0.000000e+00> : vector<8xf32>
      %49 = vector.multi_reduction <add>, %48, %cst_35 [1] : vector<8x8xf32> to vector<8xf32>
      %50 = vector.shape_cast %49 : vector<8xf32> to vector<8x1xf32>
      %51 = arith.addf %46, %50 : vector<8x1xf32>
      %c0_36 = arith.constant 0 : index
      %c0_37 = arith.constant 0 : index
      %52 = vector.load %arg10[%c0_36, %c0_37] : memref<8x1xf32, #tpu.memory_space<vmem>>, vector<8x1xf32>
      tpu.vector_store %arg10[%c0_36, %c0_37], %51 {strides = array<i32>} : memref<8x1xf32, #tpu.memory_space<vmem>>, vector<8x1xf32>,
    } else {
    }
    %true = arith.constant true
    %16 = arith.xori %13, %true : i1
    %17 = arith.extui %16 : i1 to i32
    %cst_11 = arith.constant -1.000000e+30 : f32
    %c0_i32_12 = arith.constant 0 : i32
    %18 = arith.cmpi ne, %17, %c0_i32_12 : i32
    scf.if %18 {
      %c8_i32 = arith.constant 8 : i32
      %22 = arith.muli %arg0, %c8_i32 : i32
      %23 = tpu.iota {dimensions = array<i32: 0>} : vector<8x8xi32>
      %24 = vector.broadcast %22 : i32 to vector<8x8xi32>
      %25 = arith.addi %24, %23 : vector<8x8xi32>
      %c8_i32_15 = arith.constant 8 : i32
      %26 = arith.muli %arg1, %c8_i32_15 : i32
      %27 = tpu.iota {dimensions = array<i32: 1>} : vector<8x8xi32>
      %28 = vector.broadcast %26 : i32 to vector<8x8xi32>
      %29 = arith.addi %28, %27 : vector<8x8xi32>
      %30 = arith.cmpi ne, %25, %29 : vector<8x8xi32>
      %31 = vector.broadcast %cst_11 : f32 to vector<8x8xf32>
      %32 = arith.select %30, %7, %31 : vector<8x8xi1>, vector<8x8xf32>
      %33 = arith.andi %12, %30 : vector<8x8xi1>
      %cst_16 = arith.constant dense<0xFF800000> : vector<8xf32>
      %34 = vector.multi_reduction <maximumf>, %32, %cst_16 [1] : vector<8x8xf32> to vector<8xf32>
      %35 = vector.shape_cast %34 : vector<8xf32> to vector<8x1xf32>
      %c0_17 = arith.constant 0 : index
      %c0_18 = arith.constant 0 : index
      %36 = vector.load %arg7[%c0_17, %c0_18] : memref<8x1xf32, #tpu.memory_space<vmem>>, vector<8x1xf32>
      %37 = arith.maximumf %36, %35 : vector<8x1xf32>
      %c0_19 = arith.constant 0 : index
      %c0_20 = arith.constant 0 : index
      %38 = vector.load %arg7[%c0_19, %c0_20] : memref<8x1xf32, #tpu.memory_space<vmem>>, vector<8x1xf32>
      %39 = arith.subf %38, %37 : vector<8x1xf32>
      %40 = math.exp %39 : vector<8x1xf32>
      %41 = vector.broadcast %37 : vector<8x1xf32> to vector<8x8xf32>
      %42 = arith.subf %32, %41 : vector<8x8xf32>
      %43 = math.exp %42 : vector<8x8xf32>
      %c0_21 = arith.constant 0 : index
      %c0_22 = arith.constant 0 : index
      %44 = vector.load %arg8[%c0_21, %c0_22] : memref<8x1xf32, #tpu.memory_space<vmem>>, vector<8x1xf32>
      %45 = arith.mulf %40, %44 : vector<8x1xf32>
      %cst_23 = arith.constant dense<0.000000e+00> : vector<8xf32>
      %46 = vector.multi_reduction <add>, %43, %cst_23 [1] : vector<8x8xf32> to vector<8xf32>
      %47 = vector.shape_cast %46 : vector<8xf32> to vector<8x1xf32>
      %48 = arith.addf %45, %47 : vector<8x1xf32>
      %c0_24 = arith.constant 0 : index
      %c0_25 = arith.constant 0 : index
      %49 = vector.load %arg8[%c0_24, %c0_25] : memref<8x1xf32, #tpu.memory_space<vmem>>, vector<8x1xf32>
      tpu.vector_store %arg8[%c0_24, %c0_25], %48 {strides = array<i32>} : memref<8x1xf32, #tpu.memory_space<vmem>>, vector<8x1xf32>,
      %c0_26 = arith.constant 0 : index
      %c0_27 = arith.constant 0 : index
      %50 = vector.load %arg7[%c0_26, %c0_27] : memref<8x1xf32, #tpu.memory_space<vmem>>, vector<8x1xf32>
      tpu.vector_store %arg7[%c0_26, %c0_27], %37 {strides = array<i32>} : memref<8x1xf32, #tpu.memory_space<vmem>>, vector<8x1xf32>,
      %c0_28 = arith.constant 0 : index
      %c0_29 = arith.constant 0 : index
      %51 = vector.load %arg9[%c0_28, %c0_29] : memref<8x1xf32, #tpu.memory_space<vmem>>, vector<8x1xf32>
      %cst_30 = arith.constant 0.000000e+00 : f32
      %52 = vector.broadcast %cst_30 : f32 to vector<8x8xf32>
      %53 = arith.select %33, %7, %52 : vector<8x8xi1>, vector<8x8xf32>
      %cst_31 = arith.constant dense<0.000000e+00> : vector<8xf32>
      %54 = vector.multi_reduction <add>, %53, %cst_31 [1] : vector<8x8xf32> to vector<8xf32>
      %55 = vector.shape_cast %54 : vector<8xf32> to vector<8x1xf32>
      %56 = arith.addf %51, %55 : vector<8x1xf32>
      %c0_32 = arith.constant 0 : index
      %c0_33 = arith.constant 0 : index
      %57 = vector.load %arg9[%c0_32, %c0_33] : memref<8x1xf32, #tpu.memory_space<vmem>>, vector<8x1xf32>
      tpu.vector_store %arg9[%c0_32, %c0_33], %56 {strides = array<i32>} : memref<8x1xf32, #tpu.memory_space<vmem>>, vector<8x1xf32>,
      %c0_34 = arith.constant 0 : index
      %c0_35 = arith.constant 0 : index
      %58 = vector.load %arg10[%c0_34, %c0_35] : memref<8x1xf32, #tpu.memory_space<vmem>>, vector<8x1xf32>
      %59 = arith.extui %33 : vector<8x8xi1> to vector<8x8xi32>
      %60 = arith.sitofp %59 : vector<8x8xi32> to vector<8x8xf32>
      %cst_36 = arith.constant dense<0.000000e+00> : vector<8xf32>
      %61 = vector.multi_reduction <add>, %60, %cst_36 [1] : vector<8x8xf32> to vector<8xf32>
      %62 = vector.shape_cast %61 : vector<8xf32> to vector<8x1xf32>
      %63 = arith.addf %58, %62 : vector<8x1xf32>
      %c0_37 = arith.constant 0 : index
      %c0_38 = arith.constant 0 : index
      %64 = vector.load %arg10[%c0_37, %c0_38] : memref<8x1xf32, #tpu.memory_space<vmem>>, vector<8x1xf32>
      tpu.vector_store %arg10[%c0_37, %c0_38], %63 {strides = array<i32>} : memref<8x1xf32, #tpu.memory_space<vmem>>, vector<8x1xf32>,
    } else {
    }
    %c0_i32_13 = arith.constant 0 : i32
    %19 = arith.cmpi eq, %arg1, %c0_i32_13 : i32
    %20 = arith.extui %19 : i1 to i32
    %c0_i32_14 = arith.constant 0 : i32
    %21 = arith.cmpi ne, %20, %c0_i32_14 : i32
    scf.if %21 {
      %c0_15 = arith.constant 0 : index
      %c0_16 = arith.constant 0 : index
      %22 = vector.load %arg7[%c0_15, %c0_16] : memref<8x1xf32, #tpu.memory_space<vmem>>, vector<8x1xf32>
      %c0_17 = arith.constant 0 : index
      %c0_18 = arith.constant 0 : index
      %23 = vector.load %arg8[%c0_17, %c0_18] : memref<8x1xf32, #tpu.memory_space<vmem>>, vector<8x1xf32>
      %24 = math.log %23 : vector<8x1xf32>
      %25 = arith.addf %22, %24 : vector<8x1xf32>
      %c0_19 = arith.constant 0 : index
      %c0_20 = arith.constant 0 : index
      %26 = vector.load %arg9[%c0_19, %c0_20] : memref<8x1xf32, #tpu.memory_space<vmem>>, vector<8x1xf32>
      %c0_21 = arith.constant 0 : index
      %c0_22 = arith.constant 0 : index
      %27 = vector.load %arg10[%c0_21, %c0_22] : memref<8x1xf32, #tpu.memory_space<vmem>>, vector<8x1xf32>
      %28 = arith.mulf %27, %25 : vector<8x1xf32>
      %29 = arith.subf %26, %28 : vector<8x1xf32>
      %c0_23 = arith.constant 0 : index
      %c0_24 = arith.constant 0 : index
      %30 = vector.load %arg10[%c0_23, %c0_24] : memref<8x1xf32, #tpu.memory_space<vmem>>, vector<8x1xf32>
      %cst_25 = arith.constant 9.99999997E-7 : f32
      %31 = vector.broadcast %cst_25 : f32 to vector<8x1xf32>
      %32 = arith.addf %30, %31 : vector<8x1xf32>
      %33 = tpu.reciprocal %32 {approx = true} : vector<8x1xf32> -> vector<8x1xf32>
      %34 = arith.mulf %29, %33 : vector<8x1xf32>
      %cst_26 = arith.constant 0.000000e+00 : f32
      %35 = vector.broadcast %cst_26 : f32 to vector<8x1xf32>
      %36 = arith.subf %35, %34 : vector<8x1xf32>
      %c0_27 = arith.constant 0 : index
      %c0_28 = arith.constant 0 : index
      %37 = vector.load %arg6[%c0_27, %c0_28] : memref<8x1xf32, #tpu.memory_space<vmem>>, vector<8x1xf32>
      tpu.vector_store %arg6[%c0_27, %c0_28], %36 {strides = array<i32>} : memref<8x1xf32, #tpu.memory_space<vmem>>, vector<8x1xf32>,
    } else {
    }
    return
  }
  func.func @transform_0(%arg0: i32, %arg1: i32) -> (i32, i32) {
    %c0_i32 = arith.constant 0 : i32
    %c0_i32_0 = arith.constant 0 : i32
    return %arg0, %c0_i32 : i32, i32
  }
  func.func @transform_1(%arg0: i32, %arg1: i32) -> (i32, i32) {
    %c0_i32 = arith.constant 0 : i32
    %c0_i32_0 = arith.constant 0 : i32
    return %c0_i32, %arg1 : i32, i32
  }
  func.func @transform_2(%arg0: i32, %arg1: i32) -> (i32, i32) {
    %c0_i32 = arith.constant 0 : i32
    %c0_i32_0 = arith.constant 0 : i32
    return %arg0, %c0_i32 : i32, i32
  }
  func.func @transform_3(%arg0: i32, %arg1: i32) -> (i32, i32) {
    %c0_i32 = arith.constant 0 : i32
    %c0_i32_0 = arith.constant 0 : i32
    return %c0_i32, %arg1 : i32, i32
  }
  func.func @transform_4(%arg0: i32, %arg1: i32) -> (i32, i32) {
    %c0_i32 = arith.constant 0 : i32
    %c0_i32_0 = arith.constant 0 : i32
    return %arg0, %c0_i32 : i32, i32
  }
}

</mosaic_0001>

<llo_original>
// kernel: tpu_custom_call.1
$region0: #{tpu_custom_call.1}
  #allocation0 [shape = 'u32[]', space=smem, size = 0x4, offset = 0x4, fixed_abs, tag = 'smem constant byte address 0x4 - core index']
  #allocation1 [shape = 'u32[72,128]{1,0:T(1,128)}', space=vmem, size = 0x9000, scoped, tag = 'internal scratch']
  #allocation2 [shape = 'f32[8,1]{1,0:T(8,128)}', space=vmem, size = 0x1000, scoped, tag = 'scratch operand']
  #allocation3 [shape = 'f32[8,1]{1,0:T(8,128)}', space=vmem, size = 0x1000, scoped, tag = 'scratch operand']
  #allocation4 [shape = 'f32[8,1]{1,0:T(8,128)}', space=vmem, size = 0x1000, scoped, tag = 'scratch operand']
  #allocation5 [shape = 'f32[8,1]{1,0:T(8,128)}', space=vmem, size = 0x1000, scoped, tag = 'scratch operand']
  %s0 = inlined_call_operand.vmem [shape: f32[8,128], index: 0, kind: input, shape index: {}]
  %s1 = inlined_call_operand.vmem [shape: f32[128,8], index: 1, kind: input, shape index: {}]
  %s2 = inlined_call_operand.vmem [shape: s32[8,1], index: 2, kind: input, shape index: {}]
  %s3 = inlined_call_operand.vmem [shape: s32[1,8], index: 3, kind: input, shape index: {}]
  %s4 = inlined_call_operand.vmem [shape: f32[8,1], index: 4, kind: output, shape index: {}]
  %s5 = sld [smem:[#allocation0]]
  $region42: #{tpu_custom_call.1} parent=0
    _
  %s7 = ssub.s32 1, %s5
  %s8 = scalar_select 0, %s7, %s5
  // Predicated region
  $region2: #{tpu_custom_call.1} parent=0 // pred_check
    _
  $region3: #{tpu_custom_call.1} parent=0 // pred_check_branch
    %10 = sbr.rel (0) target = $region5
  $region4: #{tpu_custom_call.1} parent=0 // pred_region
    _
  $region5: #{tpu_custom_call.1} parent=0 // pred_fallthru
    _
  // Predicated region
  $region6: #{tpu_custom_call.1} parent=0 // pred_check
    _
  $region7: #{tpu_custom_call.1} parent=0 // pred_check_branch
    %12 = sbr.rel (0) target = $region9
  $region8: #{tpu_custom_call.1} parent=0 // pred_region
    _
  $region9: #{tpu_custom_call.1} parent=0 // pred_fallthru
    _
  // Predicated region
  $region10: #{tpu_custom_call.1} parent=0 // pred_check
    _
  $region11: #{tpu_custom_call.1} parent=0 // pred_check_branch
    %14 = sbr.rel (0) target = $region13
  $region12: #{tpu_custom_call.1} parent=0 // pred_region
    _
  $region13: #{tpu_custom_call.1} parent=0 // pred_fallthru
    _
  // Predicated region
  $region14: #{tpu_custom_call.1} parent=0 // pred_check
    _
  $region15: #{tpu_custom_call.1} parent=0 // pred_check_branch
    %16 = sbr.rel (0) target = $region17
  $region16: #{tpu_custom_call.1} parent=0 // pred_region
    _
  $region17: #{tpu_custom_call.1} parent=0 // pred_fallthru
    _
  %p17 = scmp.eq.s32.totalorder 0, 0
  // Predicated region
  $region18: #{tpu_custom_call.1} parent=0 // pred_check
    %p18 = pneg %p17
  $region19: #{tpu_custom_call.1} parent=0 // pred_check_branch
    %20 = sbr.rel (%p18) target = $region21
  $region20: #{tpu_custom_call.1} parent=0 // pred_region
    %vm21 = vcmask 7168
    %22 = vst.msk [vmem:[#allocation2] sm:$0xff] %vm21, -1e+30
    %23 = vst.msk [vmem:[#allocation3] sm:$0xff] %vm21, 0.0
    %24 = vst.msk [vmem:[#allocation4] sm:$0xff] %vm21, 0.0
    %25 = vst.msk [vmem:[#allocation5] sm:$0xff] %vm21, 0.0
  $region21: #{tpu_custom_call.1} parent=0 // pred_fallthru
    _
  %v26 = vld [vmem:[%s0] sm:$0xff]
  %v27 = vld [vmem:[%s1] sm:$0xff]
  %v28 = vld [vmem:[%s1 + $0x8] sm:$0xff]
  %v29 = vld [vmem:[%s1 + $0x10] sm:$0xff]
  %v30 = vld [vmem:[%s1 + $0x18] sm:$0xff]
  %v31 = vld [vmem:[%s1 + $0x20] sm:$0xff]
  %v32 = vld [vmem:[%s1 + $0x28] sm:$0xff]
  %v33 = vld [vmem:[%s1 + $0x30] sm:$0xff]
  %v34 = vld [vmem:[%s1 + $0x38] sm:$0xff]
  %v35 = vld [vmem:[%s1 + $0x40] sm:$0xff]
  %v36 = vld [vmem:[%s1 + $0x48] sm:$0xff]
  %v37 = vld [vmem:[%s1 + $0x50] sm:$0xff]
  %v38 = vld [vmem:[%s1 + $0x58] sm:$0xff]
  %v39 = vld [vmem:[%s1 + $0x60] sm:$0xff]
  %v40 = vld [vmem:[%s1 + $0x68] sm:$0xff]
  %v41 = vld [vmem:[%s1 + $0x70] sm:$0xff]
  %v42 = vld [vmem:[%s1 + $0x78] sm:$0xff]
  %43 = vmatpush.msra.mxu0 %v42
  %44 = vmatpush.msra.mxu0 %v41
  %45 = vmatpush.msra.mxu0 %v40
  %46 = vmatpush.msra.mxu0 %v39
  %47 = vmatpush.msra.mxu0 %v38
  %48 = vmatpush.msra.mxu0 %v37
  %49 = vmatpush.msra.mxu0 %v36
  %50 = vmatpush.msra.mxu0 %v35
  %51 = vmatpush.msra.mxu0 %v34
  %52 = vmatpush.msra.mxu0 %v33
  %53 = vmatpush.msra.mxu0 %v32
  %54 = vmatpush.msra.mxu0 %v31
  %55 = vmatpush.msra.mxu0 %v30
  %56 = vmatpush.msra.mxu0 %v29
  %57 = vmatpush.msra.mxu0 %v28
  %58 = vmatpush.msra.mxu0 %v27
  %59 = vmatmul.f32.gmra.mxu0 %v26
  %v60 = vpop.f32.mrf.mxu0
  %v61 = vadd.f32 0.0, %v60
  %62 = vdwg.mxu0
  %v63 = vld [vmem:[%s2] sm:$0xff]
  %v64 = vld [vmem:[%s3] sm:$0x1]
  %65 = vset.pattern.permute.xlu0 0
  %66 = vperm.xlu0 %65, %v63
  %v67 = vpop.permute.xlu0 %66
  %v68 = vperm.slane %v64, 0
  %vm69 = vcmp.eq.s32.totalorder %v67, %v68
  %p70 = scmp.ne.s32.totalorder 0, 0
  // Predicated region
  $region22: #{tpu_custom_call.1} parent=0 // pred_check
    %p71 = pneg %p70
  $region23: #{tpu_custom_call.1} parent=0 // pred_check_branch
    %73 = sbr.rel (%p71) target = $region25
  $region24: #{tpu_custom_call.1} parent=0 // pred_region
    %vm74 = vcmask 64512
    %v75 = vsel %vm74, %v61, -inf
    %76 = vmax.xlane.f32.xlu0 %v75
    %v77 = vpop.xlane.xlu0 %76
    %v78 = vld [vmem:[#allocation2] sm:$0xff]
    %v79 = vmax.f32 %v78, %v77
    %v80 = vsub.f32 %v78, %v79
    %v81 = vmul.f32 %v80, 1.442695
    %v82 = vpow.pop %v81
    %84 = vset.pattern.permute.xlu0 0
    %85 = vperm.xlu0 %84, %v79
    %v86 = vpop.permute.xlu0 %85
    %v88 = vsub.f32 %v61, %v86
    %v89 = vmul.f32 %v88, 1.442695
    %v90 = vpow.pop %v89
    %v91 = vld [vmem:[#allocation3] sm:$0xff]
    %v92 = vmul.f32 %v82, %v91
    %v93 = vsel %vm74, %v90, 0.0
    %94 = vadd.xlane.f32.xlu0 %v93
    %v95 = vpop.xlane.xlu0 %94
    %v96 = vadd.f32 %v92, %v95
    %vm97 = vcmask 7168
    %98 = vst.msk [vmem:[#allocation3] sm:$0xff] %vm97, %v96
    %99 = vst.msk [vmem:[#allocation2] sm:$0xff] %vm97, %v79
    %v100 = vld [vmem:[#allocation4] sm:$0xff]
    %v101 = vsel %vm69, %v61, 0.0
    %v102 = vsel %vm74, %v101, 0.0
    %103 = vadd.xlane.f32.xlu0 %v102
    %v104 = vpop.xlane.xlu0 %103
    %v105 = vadd.f32 %v100, %v104
    %106 = vst.msk [vmem:[#allocation4] sm:$0xff] %vm97, %v105
    %v107 = vld [vmem:[#allocation5] sm:$0xff]
    %v108 = vsel %vm69, 1, 0
    %v109 = vcvt.s32.f32 %v108
    %v110 = vsel %vm74, %v109, 0.0
    %111 = vadd.xlane.f32.xlu0 %v110
    %v112 = vpop.xlane.xlu0 %111
    %v113 = vadd.f32 %v107, %v112
    %114 = vst.msk [vmem:[#allocation5] sm:$0xff] %vm97, %v113
  $region25: #{tpu_custom_call.1} parent=0 // pred_fallthru
    _
  %p115 = pneg %p70
  // Predicated region
  $region26: #{tpu_custom_call.1} parent=0 // pred_check
    _
  $region27: #{tpu_custom_call.1} parent=0 // pred_check_branch
    %117 = sbr.rel (%p70) target = $region29
  $region28: #{tpu_custom_call.1} parent=0 // pred_region
    %s118 = smul.u32 0, 8
    %v119 = vlaneseq
    %v120 = vshrl.u32 %v119, 7
    %v121 = vstv %s118
    %v122 = vadd.s32 %v121, %v120
    %s123 = smul.u32 0, 8
    %v124 = vlaneseq
    %v125 = vand.u32 %v124, 127
    %v126 = vstv %s123
    %v127 = vadd.s32 %v126, %v125
    %vm128 = vcmp.ne.s32.totalorder %v122, %v127
    %v129 = vsel %vm128, %v61, -1e+30
    %vm130 = vmand %vm69, %vm128
    %vm131 = vcmask 64512
    %v132 = vsel %vm131, %v129, -inf
    %133 = vmax.xlane.f32.xlu0 %v132
    %v134 = vpop.xlane.xlu0 %133
    %v135 = vld [vmem:[#allocation2] sm:$0xff]
    %v136 = vmax.f32 %v135, %v134
    %v137 = vsub.f32 %v135, %v136
    %v138 = vmul.f32 %v137, 1.442695
    %v139 = vpow.pop %v138
    %141 = vset.pattern.permute.xlu0 0
    %142 = vperm.xlu0 %141, %v136
    %v143 = vpop.permute.xlu0 %142
    %v145 = vsub.f32 %v129, %v143
    %v146 = vmul.f32 %v145, 1.442695
    %v147 = vpow.pop %v146
    %v148 = vld [vmem:[#allocation3] sm:$0xff]
    %v149 = vmul.f32 %v139, %v148
    %v150 = vsel %vm131, %v147, 0.0
    %151 = vadd.xlane.f32.xlu0 %v150
    %v152 = vpop.xlane.xlu0 %151
    %v153 = vadd.f32 %v149, %v152
    %vm154 = vcmask 7168
    %155 = vst.msk [vmem:[#allocation3] sm:$0xff] %vm154, %v153
    %156 = vst.msk [vmem:[#allocation2] sm:$0xff] %vm154, %v136
    %v157 = vld [vmem:[#allocation4] sm:$0xff]
    %v158 = vsel %vm130, %v61, 0.0
    %v159 = vsel %vm131, %v158, 0.0
    %160 = vadd.xlane.f32.xlu0 %v159
    %v161 = vpop.xlane.xlu0 %160
    %v162 = vadd.f32 %v157, %v161
    %163 = vst.msk [vmem:[#allocation4] sm:$0xff] %vm154, %v162
    %v164 = vld [vmem:[#allocation5] sm:$0xff]
    %v165 = vsel %vm130, 1, 0
    %v166 = vcvt.s32.f32 %v165
    %v167 = vsel %vm131, %v166, 0.0
    %168 = vadd.xlane.f32.xlu0 %v167
    %v169 = vpop.xlane.xlu0 %168
    %v170 = vadd.f32 %v164, %v169
    %171 = vst.msk [vmem:[#allocation5] sm:$0xff] %vm154, %v170
  $region29: #{tpu_custom_call.1} parent=0 // pred_fallthru
    _
  // Predicated region
  $region30: #{tpu_custom_call.1} parent=0 // pred_check
    %p172 = pneg %p17
  $region31: #{tpu_custom_call.1} parent=0 // pred_check_branch
    %174 = sbr.rel (%p172) target = $region33
  $region32: #{tpu_custom_call.1} parent=0 // pred_region
    %v175 = vld [vmem:[#allocation2] sm:$0xff]
    %v176 = vld [vmem:[#allocation3] sm:$0xff]
    %v177 = vlog2.pop %v176
    %v178 = vmul.f32 %v177, 0.6931472
    %v179 = vadd.f32 %v175, %v178
    %v180 = vld [vmem:[#allocation4] sm:$0xff]
    %v181 = vld [vmem:[#allocation5] sm:$0xff]
    %v182 = vmul.f32 %v181, %v179
    %v183 = vsub.f32 %v180, %v182
    %v184 = vadd.f32 %v181, 1e-06
    %v185 = vrcp.pop %v184
    %v186 = vmul.f32 %v183, %v185
    %v187 = vsub.f32 0.0, %v186
    %vm188 = vcmask 7168
    %189 = vst.msk [vmem:[%s4] sm:$0xff] %vm188, %v187
  $region33: #{tpu_custom_call.1} parent=0 // pred_fallthru
    _
  // Predicated region
  $region34: #{tpu_custom_call.1} parent=0 // pred_check
    _
  $region35: #{tpu_custom_call.1} parent=0 // pred_check_branch
    %191 = sbr.rel (0) target = $region37
  $region36: #{tpu_custom_call.1} parent=0 // pred_region
    _
  $region37: #{tpu_custom_call.1} parent=0 // pred_fallthru
    _
  // Predicated region
  $region38: #{tpu_custom_call.1} parent=0 // pred_check
    _
  $region39: #{tpu_custom_call.1} parent=0 // pred_check_branch
    %193 = sbr.rel (0) target = $region41
  $region40: #{tpu_custom_call.1} parent=0 // pred_region
    _
  $region41: #{tpu_custom_call.1} parent=0 // pred_fallthru
    _

</llo_original>
